<compile_context>
chip_gen: v6e
topology: v6e:2x2x1
jax: 0.10.0
libtpu: 0.0.40
codegen_flags: <defaults>
</compile_context>

<pallas_src>
import math
import functools

import jax
import jax.numpy as jnp
from jax.experimental import pallas as pl
from jax.experimental.pallas import tpu as pltpu


# ---------------------------------------------------------------------------
# Pallas kernel: one grid step = one batch element, all heads fused
# ---------------------------------------------------------------------------
def tupe_attn_kernel(x_ref, w_ref, bias_ref, o_ref, *, num_heads, d_head):
    # x_ref   : (1, S, D)   tokens for this batch element (compute dtype, e.g. bf16)
    # w_ref   : (3, D, D)   stacked projection weights [K, Q/scale, V] (compute dtype)
    # bias_ref: (H, S, S)   precomputed pos_q.pos_k^T/scale + relative bias (f32)
    # o_ref   : (1, S, D)   lane-dense output block
    _, S, D = x_ref.shape
    x = x_ref[0]                     # (S, D)
    cdt = x.dtype

    # Wide projections on the MXU, f32 accumulation, then back to compute dtype.
    tok_k = jnp.dot(x, w_ref[0], preferred_element_type=jnp.float32).astype(cdt)
    tok_q = jnp.dot(x, w_ref[1], preferred_element_type=jnp.float32).astype(cdt)
    tok_v = jnp.dot(x, w_ref[2], preferred_element_type=jnp.float32).astype(cdt)

    # Head selection via feature-column masks keeps everything full-tile.
    col = jax.lax.broadcasted_iota(jnp.int32, (S, D), 1)

    out = jnp.zeros((S, D), jnp.float32)
    for h in range(num_heads):                       # static unroll (H is small)
        hmask = (col >= h * d_head) & (col < (h + 1) * d_head)
        q_h = jnp.where(hmask, tok_q, jnp.zeros_like(tok_q))
        v_h = jnp.where(hmask, tok_v, jnp.zeros_like(tok_v))

        # logits_h = q_h . k over features == q_h . k_h (masked columns contribute 0).
        # Contract last dims directly (no explicit transpose of K).
        logits = jax.lax.dot_general(q_h, tok_k, (((1,), (1,)), ((), ())),
                                     preferred_element_type=jnp.float32)   # (S, S)
        logits = logits + bias_ref[h]                # scale already folded in

        # softmax (f32 epilogue)
        logits = logits - jnp.max(logits, axis=-1, keepdims=True)
        e = jnp.exp(logits)
        p = e * pl.reciprocal(jnp.sum(e, axis=-1, keepdims=True), approx=True)

        # (S,S) @ (S,D masked to head h): accumulates head h's output columns.
        out = out + jnp.dot(p.astype(cdt), v_h, preferred_element_type=jnp.float32)

    o_ref[0] = out.astype(o_ref.dtype)


def tupe_attention_pallas(x, pos, w_pos_kq, w_tok_kqv, bias_hss,
                          num_heads, d_head, compute_dtype=jnp.bfloat16):
    """x: (B,S,D), pos: (S,D), w_pos_kq: (D,2D), w_tok_kqv: (D,3D),
    bias_hss: (H,S,S). Returns (B,S,D) in x.dtype."""
    B, S, D = x.shape
    H, dh = num_heads, d_head
    scale = math.sqrt(2 * d_head)

    # ------- one-time, batch-invariant precompute (plain-JAX glue) -------
    # (1) position-position attention, folded (with 1/scale) into the additive bias
    pos_k, pos_q = jnp.split(pos.astype(jnp.float32) @ w_pos_kq.astype(jnp.float32),
                             2, axis=-1)                               # (S, D) each
    pos_attn = jnp.einsum("qhd,khd->hqk",
                          pos_q.reshape(S, H, dh), pos_k.reshape(S, H, dh))
    combined_bias = (pos_attn / scale + bias_hss).astype(jnp.float32)  # (H, S, S)

    # (2) stacked [K, Q/scale, V] projection weights; 1/sqrt(2*dh) folded into Q
    w_stack = jnp.stack([w_tok_kqv[:, :D],
                         w_tok_kqv[:, D:2 * D] / scale,
                         w_tok_kqv[:, 2 * D:]], axis=0).astype(compute_dtype)  # (3,D,D)

    x_c = x.astype(compute_dtype)

    out = pl.pallas_call(
        functools.partial(tupe_attn_kernel, num_heads=H, d_head=dh),
        out_shape=jax.ShapeDtypeStruct((B, S, D), x.dtype),
        grid_spec=pltpu.PrefetchScalarGridSpec(
            num_scalar_prefetch=0,
            grid=(B,),                                         # heads fused per step
            in_specs=[
                pl.BlockSpec((1, S, D), lambda b: (b, 0, 0)),   # x (per batch elem)
                pl.BlockSpec((3, D, D), lambda b: (0, 0, 0)),   # weights (resident)
                pl.BlockSpec((H, S, S), lambda b: (0, 0, 0)),   # bias   (resident)
            ],
            out_specs=pl.BlockSpec((1, S, D), lambda b: (b, 0, 0)),  # lane-dense out
        ),
        compiler_params=pltpu.CompilerParams(
            dimension_semantics=("parallel",)),
    )(x_c, w_stack, combined_bias)
    return out


# ---------------------------------------------------------------------------
# Relative-position bias (T5-style bucketing), plain-JAX glue
# ---------------------------------------------------------------------------
def relative_position_bucket(relative_position, bidirectional, num_buckets,
                             max_distance):
    ret = jnp.zeros_like(relative_position)
    n = -relative_position
    if bidirectional:
        num_buckets //= 2
        ret = ret + (n < 0).astype(jnp.int32) * num_buckets
        n = jnp.abs(n)
    else:
        n = jnp.maximum(n, 0)
    max_exact = num_buckets // 2
    is_small = n < max_exact
    val_if_large = max_exact + (
        jnp.log(n.astype(jnp.float32) / max_exact + 1e-6)
        / math.log(max_distance / max_exact)
        * (num_buckets - max_exact)
    ).astype(jnp.int32)
    val_if_large = jnp.minimum(val_if_large, num_buckets - 1)
    return ret + jnp.where(is_small, n, val_if_large)


def get_relative_positions(seq_len, bidirectional, num_buckets, max_distance):
    ctx = jnp.arange(seq_len)[:, None]
    mem = jnp.arange(seq_len)[None, :]
    return relative_position_bucket(mem - ctx, bidirectional, num_buckets,
                                    max_distance)


# ---------------------------------------------------------------------------
# Pure-JAX reference (mirrors the PyTorch forward; same precision cast points
# as the Pallas path so the tolerance check is meaningful)
# ---------------------------------------------------------------------------
def tupe_attention_ref(x, pos, w_pos_kq, w_tok_kqv, bias_hss, H, dh,
                       compute_dtype=jnp.bfloat16):
    B, S, D = x.shape
    scale = math.sqrt(2 * dh)
    # position attention (batch-invariant), already divided by scale
    pk, pq = jnp.split(pos @ w_pos_kq, 2, axis=-1)
    pos_attn = jnp.einsum("qhd,khd->hqk",
                          pq.reshape(S, H, dh), pk.reshape(S, H, dh)) / scale
    # token projections (scale folded into W_q, same cast points as kernel path)
    wk = w_tok_kqv[:, :D].astype(compute_dtype)
    wq = (w_tok_kqv[:, D:2 * D] / scale).astype(compute_dtype)
    wv = w_tok_kqv[:, 2 * D:].astype(compute_dtype)
    xc = x.astype(compute_dtype)
    tk = jnp.einsum("bsd,de->bse", xc, wk,
                    preferred_element_type=jnp.float32).astype(compute_dtype)
    tq = jnp.einsum("bsd,de->bse", xc, wq,
                    preferred_element_type=jnp.float32).astype(compute_dtype)
    tv = jnp.einsum("bsd,de->bse", xc, wv,
                    preferred_element_type=jnp.float32).astype(compute_dtype)
    tk = tk.reshape(B, S, H, dh)
    tq = tq.reshape(B, S, H, dh)
    tv = tv.reshape(B, S, H, dh)
    logits = jnp.einsum("bqhd,bkhd->bhqk", tq, tk,
                        preferred_element_type=jnp.float32)
    logits = logits + (pos_attn + bias_hss)[None]
    p = jax.nn.softmax(logits, axis=-1)
    out = jnp.einsum("bhqk,bkhd->bqhd", p.astype(compute_dtype), tv,
                     preferred_element_type=jnp.float32)
    return out.reshape(B, S, D).astype(x.dtype)


# ---------------------------------------------------------------------------
if __name__ == "__main__":
    # Config (small, consistent with the module)
    batch_size = 2
    seq_len = 8
    num_heads = 4
    d_head = 8
    d_model = num_heads * d_head          # 32
    max_len = 16
    num_buckets = 8
    max_distance = 16
    bidirectional = True
    relative_bias = True

    key = jax.random.PRNGKey(0)
    k_x, k_pos, k_pkq, k_kqv, k_bias = jax.random.split(key, 5)

    # inputs / deterministic parameters
    x = jax.random.normal(k_x, (batch_size, seq_len, d_model), jnp.float32)
    pos_table = 0.5 * jax.random.normal(k_pos, (max_len, d_model), jnp.float32)
    pos = pos_table[:seq_len]                                   # pos_embed(seq_len)
    w_pos_kq = 0.1 * jax.random.normal(k_pkq, (d_model, 2 * d_model), jnp.float32)
    w_tok_kqv = 0.1 * jax.random.normal(k_kqv, (d_model, 3 * d_model), jnp.float32)

    if relative_bias:
        bias_table = 0.5 * jax.random.normal(
            k_bias, (max_len * 2, num_heads), jnp.float32)      # nn.Embedding(2*max_len, H)
        rel = get_relative_positions(seq_len, bidirectional, num_buckets,
                                     max_distance)              # (S, S) int32
        bias_ssh = bias_table[rel + max_len]                    # (S, S, H)
        bias_hss = jnp.transpose(bias_ssh, (2, 0, 1))           # (H, S, S)
    else:
        bias_hss = jnp.zeros((num_heads, seq_len, seq_len), jnp.float32)

    out = tupe_attention_pallas(x, pos, w_pos_kq, w_tok_kqv, bias_hss,
                                num_heads, d_head)
    out = jax.block_until_ready(out)

    ref = tupe_attention_ref(x, pos, w_pos_kq, w_tok_kqv, bias_hss,
                             num_heads, d_head)
    assert out.shape == (batch_size, seq_len, d_model)
    max_err = float(jnp.max(jnp.abs(out - ref)))
    assert jnp.allclose(out, ref, atol=5e-3, rtol=5e-3), f"mismatch vs ref: {max_err}"

    print("KERNEL_OK")
</pallas_src>

<mosaic_0001>
module attributes {stable_mosaic.version = 11 : i64} {
  func.func @tupe_attn_kernel(%arg0: i32, %arg1: memref<1x8x32xbf16, #tpu.memory_space<vmem>>, %arg2: memref<3x32x32xbf16, #tpu.memory_space<vmem>>, %arg3: memref<4x8x8xf32, #tpu.memory_space<vmem>>, %arg4: memref<1x8x32xf32, #tpu.memory_space<vmem>>) attributes {dimension_semantics = [#tpu.dimension_semantics<parallel>], iteration_bounds = array<i64: 2>, scalar_prefetch = 0 : i64, scratch_operands = 0 : i64, tpu.core_type = #tpu.core_type<tc>, window_params = [{transform_indices = @transform_0, window_bounds = array<i64: 1, 8, 32>}, {pipeline_mode = #tpu.pipeline_mode<synchronous>, transform_indices = @transform_1, window_bounds = array<i64: 3, 32, 32>}, {pipeline_mode = #tpu.pipeline_mode<synchronous>, transform_indices = @transform_2, window_bounds = array<i64: 4, 8, 8>}, {transform_indices = @transform_3, window_bounds = array<i64: 1, 8, 32>}]} {
    %c0 = arith.constant 0 : index
    %c0_0 = arith.constant 0 : index
    %c0_1 = arith.constant 0 : index
    %0 = vector.load %arg1[%c0, %c0_0, %c0_1] : memref<1x8x32xbf16, #tpu.memory_space<vmem>>, vector<1x8x32xbf16>
    %1 = vector.shape_cast %0 : vector<1x8x32xbf16> to vector<8x32xbf16>
    %c0_2 = arith.constant 0 : index
    %c0_3 = arith.constant 0 : index
    %c0_4 = arith.constant 0 : index
    %2 = vector.load %arg2[%c0_2, %c0_3, %c0_4] : memref<3x32x32xbf16, #tpu.memory_space<vmem>>, vector<1x32x32xbf16>
    %3 = vector.shape_cast %2 : vector<1x32x32xbf16> to vector<32x32xbf16>
    %cst = arith.constant dense<0.000000e+00> : vector<8x32xf32>
    %4 = tpu.matmul %1, %3, %cst {dimension_numbers = #tpu.dot_dimension_numbers<[1], [0], [0], [1], [0, 0, 1, 1], [], []>} : vector<8x32xbf16>, vector<32x32xbf16>, vector<8x32xf32> -> vector<8x32xf32>
    %5 = arith.truncf %4 : vector<8x32xf32> to vector<8x32xbf16>
    %c1 = arith.constant 1 : index
    %c0_5 = arith.constant 0 : index
    %c0_6 = arith.constant 0 : index
    %6 = vector.load %arg2[%c1, %c0_5, %c0_6] : memref<3x32x32xbf16, #tpu.memory_space<vmem>>, vector<1x32x32xbf16>
    %7 = vector.shape_cast %6 : vector<1x32x32xbf16> to vector<32x32xbf16>
    %cst_7 = arith.constant dense<0.000000e+00> : vector<8x32xf32>
    %8 = tpu.matmul %1, %7, %cst_7 {dimension_numbers = #tpu.dot_dimension_numbers<[1], [0], [0], [1], [0, 0, 1, 1], [], []>} : vector<8x32xbf16>, vector<32x32xbf16>, vector<8x32xf32> -> vector<8x32xf32>
    %9 = arith.truncf %8 : vector<8x32xf32> to vector<8x32xbf16>
    %c2 = arith.constant 2 : index
    %c0_8 = arith.constant 0 : index
    %c0_9 = arith.constant 0 : index
    %10 = vector.load %arg2[%c2, %c0_8, %c0_9] : memref<3x32x32xbf16, #tpu.memory_space<vmem>>, vector<1x32x32xbf16>
    %11 = vector.shape_cast %10 : vector<1x32x32xbf16> to vector<32x32xbf16>
    %cst_10 = arith.constant dense<0.000000e+00> : vector<8x32xf32>
    %12 = tpu.matmul %1, %11, %cst_10 {dimension_numbers = #tpu.dot_dimension_numbers<[1], [0], [0], [1], [0, 0, 1, 1], [], []>} : vector<8x32xbf16>, vector<32x32xbf16>, vector<8x32xf32> -> vector<8x32xf32>
    %13 = arith.truncf %12 : vector<8x32xf32> to vector<8x32xbf16>
    %14 = tpu.iota {dimensions = array<i32: 1>} : vector<8x32xi32>
    %cst_11 = arith.constant 0.000000e+00 : f32
    %15 = vector.broadcast %cst_11 : f32 to vector<8x32xf32>
    %c0_i32 = arith.constant 0 : i32
    %16 = vector.broadcast %c0_i32 : i32 to vector<8x32xi32>
    %17 = arith.cmpi sge, %14, %16 : vector<8x32xi32>
    %c8_i32 = arith.constant 8 : i32
    %18 = vector.broadcast %c8_i32 : i32 to vector<8x32xi32>
    %19 = arith.cmpi slt, %14, %18 : vector<8x32xi32>
    %20 = arith.andi %17, %19 : vector<8x32xi1>
    %cst_12 = arith.constant 0.000000e+00 : bf16
    %21 = vector.broadcast %cst_12 : bf16 to vector<8x32xbf16>
    %22 = arith.select %20, %9, %21 : vector<8x32xi1>, vector<8x32xbf16>
    %cst_13 = arith.constant 0.000000e+00 : bf16
    %23 = vector.broadcast %cst_13 : bf16 to vector<8x32xbf16>
    %24 = arith.select %20, %13, %23 : vector<8x32xi1>, vector<8x32xbf16>
    %cst_14 = arith.constant dense<0.000000e+00> : vector<8x8xf32>
    %25 = tpu.matmul %22, %5, %cst_14 {dimension_numbers = #tpu.dot_dimension_numbers<[1], [1], [0], [0], [0, 0, 1, 0], [], []>} : vector<8x32xbf16>, vector<8x32xbf16>, vector<8x8xf32> -> vector<8x8xf32>
    %c0_15 = arith.constant 0 : index
    %c0_16 = arith.constant 0 : index
    %c0_17 = arith.constant 0 : index
    %26 = vector.load %arg3[%c0_15, %c0_16, %c0_17] : memref<4x8x8xf32, #tpu.memory_space<vmem>>, vector<1x8x8xf32>
    %27 = vector.shape_cast %26 : vector<1x8x8xf32> to vector<8x8xf32>
    %28 = arith.addf %25, %27 : vector<8x8xf32>
    %cst_18 = arith.constant dense<0xFF800000> : vector<8xf32>
    %29 = vector.multi_reduction <maximumf>, %28, %cst_18 [1] : vector<8x8xf32> to vector<8xf32>
    %30 = vector.shape_cast %29 : vector<8xf32> to vector<8x1xf32>
    %31 = vector.broadcast %30 : vector<8x1xf32> to vector<8x8xf32>
    %32 = arith.subf %28, %31 : vector<8x8xf32>
    %33 = math.exp %32 : vector<8x8xf32>
    %cst_19 = arith.constant dense<0.000000e+00> : vector<8xf32>
    %34 = vector.multi_reduction <add>, %33, %cst_19 [1] : vector<8x8xf32> to vector<8xf32>
    %35 = vector.shape_cast %34 : vector<8xf32> to vector<8x1xf32>
    %36 = tpu.reciprocal %35 {approx = true} : vector<8x1xf32> -> vector<8x1xf32>
    %37 = vector.broadcast %36 : vector<8x1xf32> to vector<8x8xf32>
    %38 = arith.mulf %33, %37 : vector<8x8xf32>
    %39 = arith.truncf %38 : vector<8x8xf32> to vector<8x8xbf16>
    %cst_20 = arith.constant dense<0.000000e+00> : vector<8x32xf32>
    %40 = tpu.matmul %39, %24, %cst_20 {dimension_numbers = #tpu.dot_dimension_numbers<[1], [0], [0], [1], [0, 0, 1, 1], [], []>} : vector<8x8xbf16>, vector<8x32xbf16>, vector<8x32xf32> -> vector<8x32xf32>
    %41 = arith.addf %15, %40 : vector<8x32xf32>
    %c8_i32_21 = arith.constant 8 : i32
    %42 = vector.broadcast %c8_i32_21 : i32 to vector<8x32xi32>
    %43 = arith.cmpi sge, %14, %42 : vector<8x32xi32>
    %c16_i32 = arith.constant 16 : i32
    %44 = vector.broadcast %c16_i32 : i32 to vector<8x32xi32>
    %45 = arith.cmpi slt, %14, %44 : vector<8x32xi32>
    %46 = arith.andi %43, %45 : vector<8x32xi1>
    %cst_22 = arith.constant 0.000000e+00 : bf16
    %47 = vector.broadcast %cst_22 : bf16 to vector<8x32xbf16>
    %48 = arith.select %46, %9, %47 : vector<8x32xi1>, vector<8x32xbf16>
    %cst_23 = arith.constant 0.000000e+00 : bf16
    %49 = vector.broadcast %cst_23 : bf16 to vector<8x32xbf16>
    %50 = arith.select %46, %13, %49 : vector<8x32xi1>, vector<8x32xbf16>
    %cst_24 = arith.constant dense<0.000000e+00> : vector<8x8xf32>
    %51 = tpu.matmul %48, %5, %cst_24 {dimension_numbers = #tpu.dot_dimension_numbers<[1], [1], [0], [0], [0, 0, 1, 0], [], []>} : vector<8x32xbf16>, vector<8x32xbf16>, vector<8x8xf32> -> vector<8x8xf32>
    %c1_25 = arith.constant 1 : index
    %c0_26 = arith.constant 0 : index
    %c0_27 = arith.constant 0 : index
    %52 = vector.load %arg3[%c1_25, %c0_26, %c0_27] : memref<4x8x8xf32, #tpu.memory_space<vmem>>, vector<1x8x8xf32>
    %53 = vector.shape_cast %52 : vector<1x8x8xf32> to vector<8x8xf32>
    %54 = arith.addf %51, %53 : vector<8x8xf32>
    %cst_28 = arith.constant dense<0xFF800000> : vector<8xf32>
    %55 = vector.multi_reduction <maximumf>, %54, %cst_28 [1] : vector<8x8xf32> to vector<8xf32>
    %56 = vector.shape_cast %55 : vector<8xf32> to vector<8x1xf32>
    %57 = vector.broadcast %56 : vector<8x1xf32> to vector<8x8xf32>
    %58 = arith.subf %54, %57 : vector<8x8xf32>
    %59 = math.exp %58 : vector<8x8xf32>
    %cst_29 = arith.constant dense<0.000000e+00> : vector<8xf32>
    %60 = vector.multi_reduction <add>, %59, %cst_29 [1] : vector<8x8xf32> to vector<8xf32>
    %61 = vector.shape_cast %60 : vector<8xf32> to vector<8x1xf32>
    %62 = tpu.reciprocal %61 {approx = true} : vector<8x1xf32> -> vector<8x1xf32>
    %63 = vector.broadcast %62 : vector<8x1xf32> to vector<8x8xf32>
    %64 = arith.mulf %59, %63 : vector<8x8xf32>
    %65 = arith.truncf %64 : vector<8x8xf32> to vector<8x8xbf16>
    %cst_30 = arith.constant dense<0.000000e+00> : vector<8x32xf32>
    %66 = tpu.matmul %65, %50, %cst_30 {dimension_numbers = #tpu.dot_dimension_numbers<[1], [0], [0], [1], [0, 0, 1, 1], [], []>} : vector<8x8xbf16>, vector<8x32xbf16>, vector<8x32xf32> -> vector<8x32xf32>
    %67 = arith.addf %41, %66 : vector<8x32xf32>
    %c16_i32_31 = arith.constant 16 : i32
    %68 = vector.broadcast %c16_i32_31 : i32 to vector<8x32xi32>
    %69 = arith.cmpi sge, %14, %68 : vector<8x32xi32>
    %c24_i32 = arith.constant 24 : i32
    %70 = vector.broadcast %c24_i32 : i32 to vector<8x32xi32>
    %71 = arith.cmpi slt, %14, %70 : vector<8x32xi32>
    %72 = arith.andi %69, %71 : vector<8x32xi1>
    %cst_32 = arith.constant 0.000000e+00 : bf16
    %73 = vector.broadcast %cst_32 : bf16 to vector<8x32xbf16>
    %74 = arith.select %72, %9, %73 : vector<8x32xi1>, vector<8x32xbf16>
    %cst_33 = arith.constant 0.000000e+00 : bf16
    %75 = vector.broadcast %cst_33 : bf16 to vector<8x32xbf16>
    %76 = arith.select %72, %13, %75 : vector<8x32xi1>, vector<8x32xbf16>
    %cst_34 = arith.constant dense<0.000000e+00> : vector<8x8xf32>
    %77 = tpu.matmul %74, %5, %cst_34 {dimension_numbers = #tpu.dot_dimension_numbers<[1], [1], [0], [0], [0, 0, 1, 0], [], []>} : vector<8x32xbf16>, vector<8x32xbf16>, vector<8x8xf32> -> vector<8x8xf32>
    %c2_35 = arith.constant 2 : index
    %c0_36 = arith.constant 0 : index
    %c0_37 = arith.constant 0 : index
    %78 = vector.load %arg3[%c2_35, %c0_36, %c0_37] : memref<4x8x8xf32, #tpu.memory_space<vmem>>, vector<1x8x8xf32>
    %79 = vector.shape_cast %78 : vector<1x8x8xf32> to vector<8x8xf32>
    %80 = arith.addf %77, %79 : vector<8x8xf32>
    %cst_38 = arith.constant dense<0xFF800000> : vector<8xf32>
    %81 = vector.multi_reduction <maximumf>, %80, %cst_38 [1] : vector<8x8xf32> to vector<8xf32>
    %82 = vector.shape_cast %81 : vector<8xf32> to vector<8x1xf32>
    %83 = vector.broadcast %82 : vector<8x1xf32> to vector<8x8xf32>
    %84 = arith.subf %80, %83 : vector<8x8xf32>
    %85 = math.exp %84 : vector<8x8xf32>
    %cst_39 = arith.constant dense<0.000000e+00> : vector<8xf32>
    %86 = vector.multi_reduction <add>, %85, %cst_39 [1] : vector<8x8xf32> to vector<8xf32>
    %87 = vector.shape_cast %86 : vector<8xf32> to vector<8x1xf32>
    %88 = tpu.reciprocal %87 {approx = true} : vector<8x1xf32> -> vector<8x1xf32>
    %89 = vector.broadcast %88 : vector<8x1xf32> to vector<8x8xf32>
    %90 = arith.mulf %85, %89 : vector<8x8xf32>
    %91 = arith.truncf %90 : vector<8x8xf32> to vector<8x8xbf16>
    %cst_40 = arith.constant dense<0.000000e+00> : vector<8x32xf32>
    %92 = tpu.matmul %91, %76, %cst_40 {dimension_numbers = #tpu.dot_dimension_numbers<[1], [0], [0], [1], [0, 0, 1, 1], [], []>} : vector<8x8xbf16>, vector<8x32xbf16>, vector<8x32xf32> -> vector<8x32xf32>
    %93 = arith.addf %67, %92 : vector<8x32xf32>
    %c24_i32_41 = arith.constant 24 : i32
    %94 = vector.broadcast %c24_i32_41 : i32 to vector<8x32xi32>
    %95 = arith.cmpi sge, %14, %94 : vector<8x32xi32>
    %c32_i32 = arith.constant 32 : i32
    %96 = vector.broadcast %c32_i32 : i32 to vector<8x32xi32>
    %97 = arith.cmpi slt, %14, %96 : vector<8x32xi32>
    %98 = arith.andi %95, %97 : vector<8x32xi1>
    %cst_42 = arith.constant 0.000000e+00 : bf16
    %99 = vector.broadcast %cst_42 : bf16 to vector<8x32xbf16>
    %100 = arith.select %98, %9, %99 : vector<8x32xi1>, vector<8x32xbf16>
    %cst_43 = arith.constant 0.000000e+00 : bf16
    %101 = vector.broadcast %cst_43 : bf16 to vector<8x32xbf16>
    %102 = arith.select %98, %13, %101 : vector<8x32xi1>, vector<8x32xbf16>
    %cst_44 = arith.constant dense<0.000000e+00> : vector<8x8xf32>
    %103 = tpu.matmul %100, %5, %cst_44 {dimension_numbers = #tpu.dot_dimension_numbers<[1], [1], [0], [0], [0, 0, 1, 0], [], []>} : vector<8x32xbf16>, vector<8x32xbf16>, vector<8x8xf32> -> vector<8x8xf32>
    %c3 = arith.constant 3 : index
    %c0_45 = arith.constant 0 : index
    %c0_46 = arith.constant 0 : index
    %104 = vector.load %arg3[%c3, %c0_45, %c0_46] : memref<4x8x8xf32, #tpu.memory_space<vmem>>, vector<1x8x8xf32>
    %105 = vector.shape_cast %104 : vector<1x8x8xf32> to vector<8x8xf32>
    %106 = arith.addf %103, %105 : vector<8x8xf32>
    %cst_47 = arith.constant dense<0xFF800000> : vector<8xf32>
    %107 = vector.multi_reduction <maximumf>, %106, %cst_47 [1] : vector<8x8xf32> to vector<8xf32>
    %108 = vector.shape_cast %107 : vector<8xf32> to vector<8x1xf32>
    %109 = vector.broadcast %108 : vector<8x1xf32> to vector<8x8xf32>
    %110 = arith.subf %106, %109 : vector<8x8xf32>
    %111 = math.exp %110 : vector<8x8xf32>
    %cst_48 = arith.constant dense<0.000000e+00> : vector<8xf32>
    %112 = vector.multi_reduction <add>, %111, %cst_48 [1] : vector<8x8xf32> to vector<8xf32>
    %113 = vector.shape_cast %112 : vector<8xf32> to vector<8x1xf32>
    %114 = tpu.reciprocal %113 {approx = true} : vector<8x1xf32> -> vector<8x1xf32>
    %115 = vector.broadcast %114 : vector<8x1xf32> to vector<8x8xf32>
    %116 = arith.mulf %111, %115 : vector<8x8xf32>
    %117 = arith.truncf %116 : vector<8x8xf32> to vector<8x8xbf16>
    %cst_49 = arith.constant dense<0.000000e+00> : vector<8x32xf32>
    %118 = tpu.matmul %117, %102, %cst_49 {dimension_numbers = #tpu.dot_dimension_numbers<[1], [0], [0], [1], [0, 0, 1, 1], [], []>} : vector<8x8xbf16>, vector<8x32xbf16>, vector<8x32xf32> -> vector<8x32xf32>
    %119 = arith.addf %93, %118 : vector<8x32xf32>
    %c0_50 = arith.constant 0 : index
    %c0_51 = arith.constant 0 : index
    %c0_52 = arith.constant 0 : index
    %120 = vector.load %arg4[%c0_50, %c0_51, %c0_52] : memref<1x8x32xf32, #tpu.memory_space<vmem>>, vector<1x8x32xf32>
    %121 = vector.shape_cast %120 : vector<1x8x32xf32> to vector<8x32xf32>
    %122 = vector.shape_cast %119 : vector<8x32xf32> to vector<1x8x32xf32>
    tpu.vector_store %arg4[%c0_50, %c0_51, %c0_52], %122 {strides = array<i32>} : memref<1x8x32xf32, #tpu.memory_space<vmem>>, vector<1x8x32xf32>,
    return
  }
  func.func @transform_0(%arg0: i32) -> (i32, i32, i32) {
    %c0_i32 = arith.constant 0 : i32
    %c0_i32_0 = arith.constant 0 : i32
    %c0_i32_1 = arith.constant 0 : i32
    return %arg0, %c0_i32, %c0_i32_0 : i32, i32, i32
  }
  func.func @transform_1(%arg0: i32) -> (i32, i32, i32) {
    %c0_i32 = arith.constant 0 : i32
    %c0_i32_0 = arith.constant 0 : i32
    %c0_i32_1 = arith.constant 0 : i32
    %c0_i32_2 = arith.constant 0 : i32
    return %c0_i32, %c0_i32_0, %c0_i32_1 : i32, i32, i32
  }
  func.func @transform_2(%arg0: i32) -> (i32, i32, i32) {
    %c0_i32 = arith.constant 0 : i32
    %c0_i32_0 = arith.constant 0 : i32
    %c0_i32_1 = arith.constant 0 : i32
    %c0_i32_2 = arith.constant 0 : i32
    return %c0_i32, %c0_i32_0, %c0_i32_1 : i32, i32, i32
  }
  func.func @transform_3(%arg0: i32) -> (i32, i32, i32) {
    %c0_i32 = arith.constant 0 : i32
    %c0_i32_0 = arith.constant 0 : i32
    %c0_i32_1 = arith.constant 0 : i32
    return %arg0, %c0_i32, %c0_i32_0 : i32, i32, i32
  }
}

</mosaic_0001>

<llo_original>
// kernel: tpu_custom_call.1
$region0: #{tpu_custom_call.1}
  #allocation0 [shape = 'u32[]', space=smem, size = 0x4, offset = 0x4, fixed_abs, tag = 'smem constant byte address 0x4 - core index']
  #allocation1 [shape = 'u32[144,128]{1,0:T(1,128)}', space=vmem, size = 0x12000, scoped, tag = 'internal scratch']
  %s0 = inlined_call_operand.hbm [shape: bf16[2,8,32], index: 0, kind: input, shape index: {}]
  %s1 = inlined_call_operand.hbm [shape: bf16[3,32,32], index: 1, kind: input, shape index: {}]
  %s2 = inlined_call_operand.hbm [shape: f32[4,8,8], index: 2, kind: input, shape index: {}]
  %s3 = inlined_call_operand.hbm [shape: f32[2,8,32], index: 3, kind: output, shape index: {}]
  %s4 = sld [smem:[#allocation0]]
  $region57: #{tpu_custom_call.1} parent=0
    _
  %s6 = ssub.s32 1, %s4
  %s7 = scalar_select 0, %s6, %s4
  $region1: #{tpu_custom_call.1} parent=0
    #allocation2 [shape = 'u8[4096]{0}', space=vmem, size = 0x1000, scoped, tag = 'input window, operand 0']
    #allocation3 [shape = 's32[2]{0}', space=sflag, size = 0x8, scoped, tag = 'scoped memory for tpu_custom_call.1']
    #allocation4 [shape = 's32[2]{0}', space=sflag, size = 0x8, scoped, tag = 'scoped memory for tpu_custom_call.1']
    #allocation5 [shape = 'u8[24576]{0}', space=vmem, size = 0x6000, scoped, tag = 'input window, operand 1, single buffered']
    #allocation6 [shape = 's32[1]{0}', space=sflag, size = 0x4, scoped, tag = 'scoped memory for tpu_custom_call.1']
    #allocation7 [shape = 'u8[16384]{0}', space=vmem, size = 0x4000, scoped, tag = 'input window, operand 2, single buffered']
    #allocation8 [shape = 'u8[8192]{0}', space=vmem, size = 0x2000, scoped, tag = 'output window, operand 0']
    %8 = vsyncpa [#allocation3], 0
    %s9 = scalar_lea.sflag [#allocation3], 1
    %10 = vsyncpa %s9, 0
    %11 = vsyncpa [#allocation6], 0
    %12 = vsyncpa [#allocation4], 0
    %s13 = scalar_lea.sflag [#allocation4], 1
    %14 = vsyncpa %s13, 0
    loop: start=0, step=1, limit=4
    $region2: #{tpu_custom_call.1} parent=1 // loop_pre_header
      _
    $region3: #{tpu_custom_call.1} parent=1 // loop_header
      %s16 = sphi 0, %s20
      %p17 = scmp.ge.s32.totalorder %s16, 4
      %s26 = sphi 0, %s28
      %s29 = sphi 0, %s26
      %s30 = sphi 0, %s29
      %s46 = sphi 0, %s30
      %s50 = sphi 0, %s50
      %s52 = sphi 0, %s50
      %s53 = sphi 0, %s52
      %s67 = sphi 0, %s53
      %s71 = sphi 0, %s71
      %s73 = sphi 0, %s71
      %s74 = sphi 0, %s73
      %s88 = sphi 0, %s74
      %s94 = sphi 0, %s96
      %s97 = sphi 0, %s94
      %s98 = sphi 0, %s97
      %s114 = sphi 0, %s98
    $region4: #{tpu_custom_call.1} parent=1 // loop_header_branch
      %19 = sbr.rel (%p17) target = $region8
    $region5: #{tpu_custom_call.1} parent=1 // loop_body
      %s21 = ssub.s32 %s16, 1
      %s22 = ssub.s32 %s16, 2
      %s23 = sadd.s32 %s16, 1
      %s24 = ssub.s32 %s16, %s23
      %p25 = scmp.eq.s32.totalorder %s24, 0
      %s27 = sadd.s32 %s26, 1
      %s28 = scalar_select %p25, %s26, %s27
      %p31 = pneg %p25
      %p32 = scmp.eq.s32.totalorder %s16, 1
      %p33 = por %p31, %p32
      %p34 = scmp.ne.s32.totalorder %s26, %s29
      %p35 = scmp.eq.s32.totalorder %s16, 0
      %p36 = por %p34, %p35
      %p37 = scmp.ne.s32.totalorder %s26, %s29
      %p38 = scmp.eq.s32.totalorder %s21, 1
      %p39 = por %p37, %p38
      %p40 = scmp.ne.s32.totalorder %s29, %s30
      %p41 = scmp.eq.s32.totalorder %s21, 0
      %p42 = por %p40, %p41
      %p43 = scmp.ne.s32.totalorder %s29, %s30
      %p44 = scmp.eq.s32.totalorder %s22, 1
      %p45 = por %p43, %p44
      %p47 = scmp.ne.s32.totalorder %s30, %s46
      %p48 = scmp.eq.s32.totalorder %s22, 0
      %p49 = por %p47, %p48
      %s51 = sadd.s32 %s50, 1
      %p54 = scmp.eq.s32.totalorder %s16, 1
      %p55 = scmp.ne.s32.totalorder %s50, %s52
      %p56 = scmp.eq.s32.totalorder %s16, 0
      %p57 = por %p55, %p56
      %p58 = scmp.ne.s32.totalorder %s50, %s52
      %p59 = scmp.eq.s32.totalorder %s21, 1
      %p60 = por %p58, %p59
      %p61 = scmp.ne.s32.totalorder %s52, %s53
      %p62 = scmp.eq.s32.totalorder %s21, 0
      %p63 = por %p61, %p62
      %p64 = scmp.ne.s32.totalorder %s52, %s53
      %p65 = scmp.eq.s32.totalorder %s22, 1
      %p66 = por %p64, %p65
      %p68 = scmp.ne.s32.totalorder %s53, %s67
      %p69 = scmp.eq.s32.totalorder %s22, 0
      %p70 = por %p68, %p69
      %s72 = sadd.s32 %s71, 1
      %p75 = scmp.eq.s32.totalorder %s16, 1
      %p76 = scmp.ne.s32.totalorder %s71, %s73
      %p77 = scmp.eq.s32.totalorder %s16, 0
      %p78 = por %p76, %p77
      %p79 = scmp.ne.s32.totalorder %s71, %s73
      %p80 = scmp.eq.s32.totalorder %s21, 1
      %p81 = por %p79, %p80
      %p82 = scmp.ne.s32.totalorder %s73, %s74
      %p83 = scmp.eq.s32.totalorder %s21, 0
      %p84 = por %p82, %p83
      %p85 = scmp.ne.s32.totalorder %s73, %s74
      %p86 = scmp.eq.s32.totalorder %s22, 1
      %p87 = por %p85, %p86
      %p89 = scmp.ne.s32.totalorder %s74, %s88
      %p90 = scmp.eq.s32.totalorder %s22, 0
      %p91 = por %p89, %p90
      %s92 = ssub.s32 %s16, %s23
      %p93 = scmp.eq.s32.totalorder %s92, 0
      %s95 = sadd.s32 %s94, 1
      %s96 = scalar_select %p93, %s94, %s95
      %p99 = pneg %p93
      %p100 = scmp.eq.s32.totalorder %s16, 1
      %p101 = por %p99, %p100
      %p102 = scmp.ne.s32.totalorder %s94, %s97
      %p103 = scmp.eq.s32.totalorder %s16, 0
      %p104 = por %p102, %p103
      %p105 = scmp.ne.s32.totalorder %s94, %s97
      %p106 = scmp.eq.s32.totalorder %s21, 1
      %p107 = por %p105, %p106
      %p108 = scmp.ne.s32.totalorder %s97, %s98
      %p109 = scmp.eq.s32.totalorder %s21, 0
      %p110 = por %p108, %p109
      %p111 = scmp.ne.s32.totalorder %s97, %s98
      %p112 = scmp.eq.s32.totalorder %s22, 1
      %p113 = por %p111, %p112
      %p115 = scmp.ne.s32.totalorder %s98, %s114
      %p116 = scmp.eq.s32.totalorder %s22, 0
      %p117 = por %p115, %p116
      %p118 = scmp.le.s32.totalorder 1, %s16
      %p119 = scmp.lt.s32.totalorder %s16, 3
      %p120 = pnand %p118, %p119
      %p121 = pneg %p120
      // Predicated region
      $region9: #{tpu_custom_call.1} parent=5 // pred_check
        _
      $region10: #{tpu_custom_call.1} parent=5 // pred_check_branch
        %123 = sbr.rel (%p120) target = $region12
      $region11: #{tpu_custom_call.1} parent=5 // pred_region
        %s124 = ssub.s32 %s16, 1
        // Predicated region
        $region13: #{tpu_custom_call.1} parent=11 // pred_check
          %p125 = pneg %p63
        $region14: #{tpu_custom_call.1} parent=11 // pred_check_branch
          %127 = sbr.rel (%p125) target = $region16
        $region15: #{tpu_custom_call.1} parent=11 // pred_region
          %s129 = ssub.s32 768, 768
          %130 = vsyncadd [#allocation6], %s129
          %s131 = sshll.u32 [#allocation5], 4
          %s132 = int_to_ptr.vmem [resolvable:$true] %s131
          %137 = dma.hbm_to_vmem [thread:$0]  %s1, 768, %s132, [#allocation6], 64, 64, 4
        $region16: #{tpu_custom_call.1} parent=11 // pred_fallthru
          _
        // Predicated region
        $region17: #{tpu_custom_call.1} parent=11 // pred_check
          %p138 = pneg %p84
        $region18: #{tpu_custom_call.1} parent=11 // pred_check_branch
          %140 = sbr.rel (%p138) target = $region20
        $region19: #{tpu_custom_call.1} parent=11 // pred_region
          %s142 = ssub.s32 512, 512
          %143 = vsyncadd [#allocation6], %s142
          %s144 = sshll.u32 [#allocation7], 4
          %s145 = int_to_ptr.vmem [resolvable:$true] %s144
          %150 = dma.hbm_to_vmem [thread:$0]  %s2, 512, %s145, [#allocation6], 128, 128, 8
        $region20: #{tpu_custom_call.1} parent=11 // pred_fallthru
          _
      $region12: #{tpu_custom_call.1} parent=5 // pred_fallthru
        _
      %p151 = scmp.lt.s32.totalorder %s16, 2
      // Predicated region
      $region21: #{tpu_custom_call.1} parent=5 // pred_check
        %p152 = pneg %p151
      $region22: #{tpu_custom_call.1} parent=5 // pred_check_branch
        %154 = sbr.rel (%p152) target = $region24
      $region23: #{tpu_custom_call.1} parent=5 // pred_region
        // Predicated region
        $region25: #{tpu_custom_call.1} parent=23 // pred_check
          %p155 = pneg %p36
        $region26: #{tpu_custom_call.1} parent=23 // pred_check_branch
          %157 = sbr.rel (%p155) target = $region28
        $region27: #{tpu_custom_call.1} parent=23 // pred_region
          %s158 = sand.u32 %s26, 1
          %s159 = scalar_lea.sflag [#allocation3], %s158
          %s160 = sand.u32 %s26, 1
          %s161 = smul.addr %s160, 4
          %s162 = scalar_lea.vmem [#allocation2], %s161
          %s164 = ssub.s32 64, 64
          %165 = vsyncadd %s159, %s164
          %s166 = smul.addr %s16, 64
          %s167 = scalar_lea.hbm %s0, %s166
          %s169 = sshll.u32 %s162, 4
          %s170 = int_to_ptr.vmem [resolvable:$true] %s169
          %172 = dma.hbm_to_vmem [thread:$0]  %s167, 64, %s170, %s159
        $region28: #{tpu_custom_call.1} parent=23 // pred_fallthru
          _
      $region24: #{tpu_custom_call.1} parent=5 // pred_fallthru
        _
      %p173 = scmp.le.s32.totalorder 1, %s16
      %p174 = scmp.lt.s32.totalorder %s16, 3
      %p175 = pnand %p173, %p174
      %p176 = pneg %p175
      // Predicated region
      $region29: #{tpu_custom_call.1} parent=5 // pred_check
        _
      $region30: #{tpu_custom_call.1} parent=5 // pred_check_branch
        %178 = sbr.rel (%p175) target = $region32
      $region31: #{tpu_custom_call.1} parent=5 // pred_region
        %s179 = ssub.s32 %s16, 1
        %s180 = sand.u32 %s29, 1
        %s181 = scalar_lea.sflag [#allocation3], %s180
        %s182 = sand.u32 %s29, 1
        %s183 = smul.addr %s182, 4
        %s184 = scalar_lea.vmem [#allocation2], %s183
        // Predicated region
        $region33: #{tpu_custom_call.1} parent=31 // pred_check
          %p185 = pneg %p42
        $region34: #{tpu_custom_call.1} parent=31 // pred_check_branch
          %187 = sbr.rel (%p185) target = $region36
        $region35: #{tpu_custom_call.1} parent=31 // pred_region
          %188 = dma.done %s181, 64
        $region36: #{tpu_custom_call.1} parent=31 // pred_fallthru
          _
        // Predicated region
        $region37: #{tpu_custom_call.1} parent=31 // pred_check
          %p189 = pneg %p63
        $region38: #{tpu_custom_call.1} parent=31 // pred_check_branch
          %191 = sbr.rel (%p189) target = $region40
        $region39: #{tpu_custom_call.1} parent=31 // pred_region
          %192 = dma.done [#allocation6], 768
        $region40: #{tpu_custom_call.1} parent=31 // pred_fallthru
          _
        // Predicated region
        $region41: #{tpu_custom_call.1} parent=31 // pred_check
          %p193 = pneg %p84
        $region42: #{tpu_custom_call.1} parent=31 // pred_check_branch
          %195 = sbr.rel (%p193) target = $region44
        $region43: #{tpu_custom_call.1} parent=31 // pred_region
          %196 = dma.done [#allocation6], 512
        $region44: #{tpu_custom_call.1} parent=31 // pred_fallthru
          _
        %s197 = sand.u32 %s29, 1
        %s198 = scalar_lea.sflag [#allocation3], %s197
        %s199 = sand.u32 %s29, 1
        %s200 = smul.addr %s199, 4
        %s201 = scalar_lea.vmem [#allocation2], %s200
        %p202 = pneg %p42
        %p203 = pneg %p39
        %p204 = pneg %p63
        %p205 = pneg %p60
        %p206 = pneg %p84
        %p207 = pneg %p81
        %p208 = pneg %p110
        %p209 = pneg %p107
        %s210 = sand.u32 %s97, 1
        %s211 = scalar_lea.sflag [#allocation4], %s210
        %s212 = sand.u32 %s97, 1
        %s213 = smul.addr %s212, 8
        %s214 = scalar_lea.vmem [#allocation8], %s213
        %v216 = vld [vmem:[%s184] sm:$0xf]
        %v217 = vld [vmem:[#allocation5] sm:$0xf]
        %v218 = vld [vmem:[#allocation5 + $0x4] sm:$0xf]
        %v219 = vld [vmem:[#allocation5 + $0x8] sm:$0xf]
        %v220 = vld [vmem:[#allocation5 + $0xc] sm:$0xf]
        %v225 = vunpack.c.l.b16 %v217
        %v226 = vunpack.c.l.b16 %v218
        %v227 = vunpack.c.l.b16 %v219
        %v228 = vunpack.c.l.b16 %v220
        %v229 = vpack.c.b16 %v226, %v225
        %v230 = vpack.c.b16 %v228, %v227
        %vm233 = vcmask 261120
        %v235 = vsel %vm233, %v216, 0
        %237 = vmatprep.subr.bf16.mxu0 0
        %238 = vmatpush1.bf16.msra.mxu0 0
        %239 = vmatprep.subr.bf16.mxu0 0
        %240 = vmatpush1.bf16.msra.mxu0 0
        %241 = vmatprep.subr.bf16.mxu0 0
        %242 = vmatpush1.bf16.msra.mxu0 0
        %243 = vmatprep.subr.bf16.mxu0 0
        %244 = vmatpush1.bf16.msra.mxu0 0
        %245 = vmatprep.subr.bf16.mxu0 0
        %246 = vmatpush1.bf16.msra.mxu0 0
        %247 = vmatprep.subr.bf16.mxu0 0
        %248 = vmatpush1.bf16.msra.mxu0 0
        %249 = vmatprep.subr.bf16.mxu0 0
        %250 = vmatpush1.bf16.msra.mxu0 %v230
        %251 = vmatprep.subr.bf16.mxu0 0
        %252 = vmatpush1.bf16.msra.mxu0 %v229
        %253 = vmatprep.subr.bf16.mxu0 0
        %254 = vmatpush2.bf16.msra.mxu0 0
        %255 = vmatprep.subr.bf16.mxu0 0
        %256 = vmatpush2.bf16.msra.mxu0 0
        %257 = vmatprep.subr.bf16.mxu0 0
        %258 = vmatpush2.bf16.msra.mxu0 0
        %259 = vmatprep.subr.bf16.mxu0 0
        %260 = vmatpush2.bf16.msra.mxu0 0
        %261 = vmatprep.subr.bf16.mxu0 0
        %262 = vmatpush2.bf16.msra.mxu0 0
        %263 = vmatprep.subr.bf16.mxu0 0
        %264 = vmatpush2.bf16.msra.mxu0 0
        %265 = vmatprep.subr.bf16.mxu0 0
        %266 = vmatpush2.bf16.msra.mxu0 0
        %267 = vmatprep.subr.bf16.mxu0 0
        %268 = vmatpush2.bf16.msra.mxu0 0
        %269 = vmatprep.mubr.bf16.mxu0 0
        %270 = vmatmul.mubr.bf16.gmra.mxu0 %v235
        %v271 = vpop.f32.mrf.mxu0
        %v272 = vadd.f32 0.0, %v271
        %v273 = vpop.f32.mrf.mxu0
        %v274 = vpop.f32.mrf.mxu0
        %v275 = vpop.f32.mrf.mxu0
        %276 = vdwg.mxu0
        %v277 = vpack.c.bf16 %v272, %v272
        %s278 = scalar_lea.vmem [#allocation5], 16
        %v279 = vld [vmem:[%s278] sm:$0xf]
        %v280 = vld [vmem:[%s278 + $0x4] sm:$0xf]
        %v281 = vld [vmem:[%s278 + $0x8] sm:$0xf]
        %v282 = vld [vmem:[%s278 + $0xc] sm:$0xf]
        %v287 = vunpack.c.l.b16 %v279
        %v288 = vunpack.c.l.b16 %v280
        %v289 = vunpack.c.l.b16 %v281
        %v290 = vunpack.c.l.b16 %v282
        %v291 = vpack.c.b16 %v288, %v287
        %v292 = vpack.c.b16 %v290, %v289
        %295 = vmatprep.subr.bf16.mxu0 0
        %296 = vmatpush1.bf16.msra.mxu0 0
        %297 = vmatprep.subr.bf16.mxu0 0
        %298 = vmatpush1.bf16.msra.mxu0 0
        %299 = vmatprep.subr.bf16.mxu0 0
        %300 = vmatpush1.bf16.msra.mxu0 0
        %301 = vmatprep.subr.bf16.mxu0 0
        %302 = vmatpush1.bf16.msra.mxu0 0
        %303 = vmatprep.subr.bf16.mxu0 0
        %304 = vmatpush1.bf16.msra.mxu0 0
        %305 = vmatprep.subr.bf16.mxu0 0
        %306 = vmatpush1.bf16.msra.mxu0 0
        %307 = vmatprep.subr.bf16.mxu0 0
        %308 = vmatpush1.bf16.msra.mxu0 %v292
        %309 = vmatprep.subr.bf16.mxu0 0
        %310 = vmatpush1.bf16.msra.mxu0 %v291
        %311 = vmatprep.subr.bf16.mxu0 0
        %312 = vmatpush2.bf16.msra.mxu0 0
        %313 = vmatprep.subr.bf16.mxu0 0
        %314 = vmatpush2.bf16.msra.mxu0 0
        %315 = vmatprep.subr.bf16.mxu0 0
        %316 = vmatpush2.bf16.msra.mxu0 0
        %317 = vmatprep.subr.bf16.mxu0 0
        %318 = vmatpush2.bf16.msra.mxu0 0
        %319 = vmatprep.subr.bf16.mxu0 0
        %320 = vmatpush2.bf16.msra.mxu0 0
        %321 = vmatprep.subr.bf16.mxu0 0
        %322 = vmatpush2.bf16.msra.mxu0 0
        %323 = vmatprep.subr.bf16.mxu0 0
        %324 = vmatpush2.bf16.msra.mxu0 0
        %325 = vmatprep.subr.bf16.mxu0 0
        %326 = vmatpush2.bf16.msra.mxu0 0
        %327 = vmatprep.mubr.bf16.mxu0 0
        %328 = vmatmul.mubr.bf16.gmra.mxu0 %v235
        %v329 = vpop.f32.mrf.mxu0
        %v330 = vadd.f32 0.0, %v329
        %v331 = vpop.f32.mrf.mxu0
        %v332 = vpop.f32.mrf.mxu0
        %v333 = vpop.f32.mrf.mxu0
        %334 = vdwg.mxu0
        %v335 = vpack.c.bf16 %v330, %v330
        %s336 = scalar_lea.vmem [#allocation5], 32
        %v337 = vld [vmem:[%s336] sm:$0xf]
        %v338 = vld [vmem:[%s336 + $0x4] sm:$0xf]
        %v339 = vld [vmem:[%s336 + $0x8] sm:$0xf]
        %v340 = vld [vmem:[%s336 + $0xc] sm:$0xf]
        %v345 = vunpack.c.l.b16 %v337
        %v346 = vunpack.c.l.b16 %v338
        %v347 = vunpack.c.l.b16 %v339
        %v348 = vunpack.c.l.b16 %v340
        %v349 = vpack.c.b16 %v346, %v345
        %v350 = vpack.c.b16 %v348, %v347
        %353 = vmatprep.subr.bf16.mxu0 0
        %354 = vmatpush1.bf16.msra.mxu0 0
        %355 = vmatprep.subr.bf16.mxu0 0
        %356 = vmatpush1.bf16.msra.mxu0 0
        %357 = vmatprep.subr.bf16.mxu0 0
        %358 = vmatpush1.bf16.msra.mxu0 0
        %359 = vmatprep.subr.bf16.mxu0 0
        %360 = vmatpush1.bf16.msra.mxu0 0
        %361 = vmatprep.subr.bf16.mxu0 0
        %362 = vmatpush1.bf16.msra.mxu0 0
        %363 = vmatprep.subr.bf16.mxu0 0
        %364 = vmatpush1.bf16.msra.mxu0 0
        %365 = vmatprep.subr.bf16.mxu0 0
        %366 = vmatpush1.bf16.msra.mxu0 %v350
        %367 = vmatprep.subr.bf16.mxu0 0
        %368 = vmatpush1.bf16.msra.mxu0 %v349
        %369 = vmatprep.subr.bf16.mxu0 0
        %370 = vmatpush2.bf16.msra.mxu0 0
        %371 = vmatprep.subr.bf16.mxu0 0
        %372 = vmatpush2.bf16.msra.mxu0 0
        %373 = vmatprep.subr.bf16.mxu0 0
        %374 = vmatpush2.bf16.msra.mxu0 0
        %375 = vmatprep.subr.bf16.mxu0 0
        %376 = vmatpush2.bf16.msra.mxu0 0
        %377 = vmatprep.subr.bf16.mxu0 0
        %378 = vmatpush2.bf16.msra.mxu0 0
        %379 = vmatprep.subr.bf16.mxu0 0
        %380 = vmatpush2.bf16.msra.mxu0 0
        %381 = vmatprep.subr.bf16.mxu0 0
        %382 = vmatpush2.bf16.msra.mxu0 0
        %383 = vmatprep.subr.bf16.mxu0 0
        %384 = vmatpush2.bf16.msra.mxu0 0
        %385 = vmatprep.mubr.bf16.mxu0 0
        %386 = vmatmul.mubr.bf16.gmra.mxu0 %v235
        %v387 = vpop.f32.mrf.mxu0
        %v388 = vadd.f32 0.0, %v387
        %v389 = vpop.f32.mrf.mxu0
        %v390 = vpop.f32.mrf.mxu0
        %v391 = vpop.f32.mrf.mxu0
        %392 = vdwg.mxu0
        %v393 = vpack.c.bf16 %v388, %v388
        %v394 = vlaneseq
        %v395 = vand.u32 %v394, 127
        %vm396 = vcmp.ge.s32.totalorder %v395, 0
        %vm397 = vcmp.lt.s32.totalorder %v395, 8
        %vm398 = vmand %vm396, %vm397
        %vm399 = vmpackc.low %vm398, %vm398
        %v400 = vsel %vm399, %v335, 0
        %v401 = vsel %vm399, %v393, 0
        %v402 = vld [vmem:[#allocation7] sm:$0xff]
        %v404 = vsel %vm233, %v400, 0
        %v407 = vsel %vm233, %v277, 0
        %409 = vmatprep.subr.bf16.mxu0 0
        %410 = vmatpush1.bf16.xpose.msra.mxu0 0
        %411 = vmatprep.subr.bf16.mxu0 0
        %412 = vmatpush1.bf16.xpose.msra.mxu0 0
        %413 = vmatprep.subr.bf16.mxu0 0
        %414 = vmatpush1.bf16.xpose.msra.mxu0 0
        %415 = vmatprep.subr.bf16.mxu0 0
        %416 = vmatpush1.bf16.xpose.msra.mxu0 0
        %417 = vmatprep.subr.bf16.mxu0 0
        %418 = vmatpush1.bf16.xpose.msra.mxu0 0
        %419 = vmatprep.subr.bf16.mxu0 0
        %420 = vmatpush1.bf16.xpose.msra.mxu0 0
        %421 = vmatprep.subr.bf16.mxu0 0
        %422 = vmatpush1.bf16.xpose.msra.mxu0 0
        %423 = vmatprep.subr.bf16.mxu0 0
        %424 = vmatpush1.bf16.xpose.msra.mxu0 %v407
        %425 = vmatprep.subr.bf16.mxu0 0
        %426 = vmatpush2.bf16.xpose.msra.mxu0 0
        %427 = vmatprep.subr.bf16.mxu0 0
        %428 = vmatpush2.bf16.xpose.msra.mxu0 0
        %429 = vmatprep.subr.bf16.mxu0 0
        %430 = vmatpush2.bf16.xpose.msra.mxu0 0
        %431 = vmatprep.subr.bf16.mxu0 0
        %432 = vmatpush2.bf16.xpose.msra.mxu0 0
        %433 = vmatprep.subr.bf16.mxu0 0
        %434 = vmatpush2.bf16.xpose.msra.mxu0 0
        %435 = vmatprep.subr.bf16.mxu0 0
        %436 = vmatpush2.bf16.xpose.msra.mxu0 0
        %437 = vmatprep.subr.bf16.mxu0 0
        %438 = vmatpush2.bf16.xpose.msra.mxu0 0
        %439 = vmatprep.subr.bf16.mxu0 0
        %440 = vmatpush2.bf16.xpose.msra.mxu0 0
        %441 = vmatprep.mubr.bf16.mxu0 0
        %442 = vmatmul.mubr.bf16.gmra.mxu0 %v404
        %v443 = vpop.f32.mrf.mxu0
        %v444 = vadd.f32 %v402, %v443
        %v445 = vpop.f32.mrf.mxu0
        %v446 = vpop.f32.mrf.mxu0
        %v447 = vpop.f32.mrf.mxu0
        %448 = vdwg.mxu0
        %vm449 = vcmask 64512
        %v450 = vsel %vm449, %v444, -inf
        %451 = vmax.xlane.f32.xlu0 %v450
        %v452 = vpop.xlane.xlu0 %451
        %v453 = vsub.f32 %v444, %v452
        %v454 = vmul.f32 %v453, 1.442695
        %v455 = vpow.pop %v454
        %v456 = vsel %vm449, %v455, 0.0
        %457 = vadd.xlane.f32.xlu0 %v456
        %v458 = vpop.xlane.xlu0 %457
        %v459 = vrcp.pop %v458
        %v460 = vmul.f32 %v455, %v459
        %v461 = vpack.c.bf16 %v460, %v460
        %vm462 = vcmp.ge.s32.totalorder %v395, 8
        %vm463 = vcmp.lt.s32.totalorder %v395, 16
        %vm464 = vmand %vm462, %vm463
        %vm465 = vmpackc.low %vm464, %vm464
        %v466 = vsel %vm465, %v335, 0
        %v467 = vsel %vm465, %v393, 0
        %s468 = scalar_lea.vmem [#allocation7], 8
        %v469 = vld [vmem:[%s468] sm:$0xff]
        %v471 = vsel %vm233, %v466, 0
        %473 = vmatprep.subr.bf16.mxu0 0
        %474 = vmatpush1.bf16.xpose.msra.mxu0 0
        %475 = vmatprep.subr.bf16.mxu0 0
        %476 = vmatpush1.bf16.xpose.msra.mxu0 0
        %477 = vmatprep.subr.bf16.mxu0 0
        %478 = vmatpush1.bf16.xpose.msra.mxu0 0
        %479 = vmatprep.subr.bf16.mxu0 0
        %480 = vmatpush1.bf16.xpose.msra.mxu0 0
        %481 = vmatprep.subr.bf16.mxu0 0
        %482 = vmatpush1.bf16.xpose.msra.mxu0 0
        %483 = vmatprep.subr.bf16.mxu0 0
        %484 = vmatpush1.bf16.xpose.msra.mxu0 0
        %485 = vmatprep.subr.bf16.mxu0 0
        %486 = vmatpush1.bf16.xpose.msra.mxu0 0
        %487 = vmatprep.subr.bf16.mxu0 0
        %488 = vmatpush1.bf16.xpose.msra.mxu0 %v407
        %489 = vmatprep.subr.bf16.mxu0 0
        %490 = vmatpush2.bf16.xpose.msra.mxu0 0
        %491 = vmatprep.subr.bf16.mxu0 0
        %492 = vmatpush2.bf16.xpose.msra.mxu0 0
        %493 = vmatprep.subr.bf16.mxu0 0
        %494 = vmatpush2.bf16.xpose.msra.mxu0 0
        %495 = vmatprep.subr.bf16.mxu0 0
        %496 = vmatpush2.bf16.xpose.msra.mxu0 0
        %497 = vmatprep.subr.bf16.mxu0 0
        %498 = vmatpush2.bf16.xpose.msra.mxu0 0
        %499 = vmatprep.subr.bf16.mxu0 0
        %500 = vmatpush2.bf16.xpose.msra.mxu0 0
        %501 = vmatprep.subr.bf16.mxu0 0
        %502 = vmatpush2.bf16.xpose.msra.mxu0 0
        %503 = vmatprep.subr.bf16.mxu0 0
        %504 = vmatpush2.bf16.xpose.msra.mxu0 0
        %505 = vmatprep.mubr.bf16.mxu0 0
        %506 = vmatmul.mubr.bf16.gmra.mxu0 %v471
        %v507 = vpop.f32.mrf.mxu0
        %v508 = vadd.f32 %v469, %v507
        %v509 = vpop.f32.mrf.mxu0
        %v510 = vpop.f32.mrf.mxu0
        %v511 = vpop.f32.mrf.mxu0
        %512 = vdwg.mxu0
        %v513 = vsel %vm449, %v508, -inf
        %514 = vmax.xlane.f32.xlu0 %v513
        %v515 = vpop.xlane.xlu0 %514
        %v516 = vsub.f32 %v508, %v515
        %v517 = vmul.f32 %v516, 1.442695
        %v518 = vpow.pop %v517
        %v519 = vsel %vm449, %v518, 0.0
        %520 = vadd.xlane.f32.xlu0 %v519
        %v521 = vpop.xlane.xlu0 %520
        %v522 = vrcp.pop %v521
        %v523 = vmul.f32 %v518, %v522
        %v524 = vpack.c.bf16 %v523, %v523
        %v526 = vsel %vm449, %v524, 0
        %vm528 = vcmask 1043456
        %v530 = vsel %vm528, %v467, 0
        %532 = vmatprep.subr.bf16.mxu0 0
        %533 = vmatpush1.bf16.msra.mxu0 0
        %534 = vmatprep.subr.bf16.mxu0 0
        %535 = vmatpush1.bf16.msra.mxu0 0
        %536 = vmatprep.subr.bf16.mxu0 0
        %537 = vmatpush1.bf16.msra.mxu0 0
        %538 = vmatprep.subr.bf16.mxu0 0
        %539 = vmatpush1.bf16.msra.mxu0 0
        %540 = vmatprep.subr.bf16.mxu0 0
        %541 = vmatpush1.bf16.msra.mxu0 0
        %542 = vmatprep.subr.bf16.mxu0 0
        %543 = vmatpush1.bf16.msra.mxu0 0
        %544 = vmatprep.subr.bf16.mxu0 0
        %545 = vmatpush1.bf16.msra.mxu0 0
        %546 = vmatprep.subr.bf16.mxu0 0
        %547 = vmatpush1.bf16.msra.mxu0 %v530
        %548 = vmatprep.subr.bf16.mxu0 0
        %549 = vmatpush2.bf16.msra.mxu0 0
        %550 = vmatprep.subr.bf16.mxu0 0
        %551 = vmatpush2.bf16.msra.mxu0 0
        %552 = vmatprep.subr.bf16.mxu0 0
        %553 = vmatpush2.bf16.msra.mxu0 0
        %554 = vmatprep.subr.bf16.mxu0 0
        %555 = vmatpush2.bf16.msra.mxu0 0
        %556 = vmatprep.subr.bf16.mxu0 0
        %557 = vmatpush2.bf16.msra.mxu0 0
        %558 = vmatprep.subr.bf16.mxu0 0
        %559 = vmatpush2.bf16.msra.mxu0 0
        %560 = vmatprep.subr.bf16.mxu0 0
        %561 = vmatpush2.bf16.msra.mxu0 0
        %562 = vmatprep.subr.bf16.mxu0 0
        %563 = vmatpush2.bf16.msra.mxu0 0
        %564 = vmatprep.mubr.bf16.mxu0 0
        %565 = vmatmul.mubr.bf16.gmra.mxu0 %v526
        %v566 = vpop.f32.mrf.mxu0
        %v567 = vadd.f32 0.0, %v566
        %v568 = vpop.f32.mrf.mxu0
        %v569 = vpop.f32.mrf.mxu0
        %v570 = vpop.f32.mrf.mxu0
        %571 = vdwg.mxu0
        %v573 = vsel %vm449, %v461, 0
        %v576 = vsel %vm528, %v401, 0
        %578 = vmatprep.subr.bf16.mxu0 0
        %579 = vmatpush1.bf16.msra.mxu0 0
        %580 = vmatprep.subr.bf16.mxu0 0
        %581 = vmatpush1.bf16.msra.mxu0 0
        %582 = vmatprep.subr.bf16.mxu0 0
        %583 = vmatpush1.bf16.msra.mxu0 0
        %584 = vmatprep.subr.bf16.mxu0 0
        %585 = vmatpush1.bf16.msra.mxu0 0
        %586 = vmatprep.subr.bf16.mxu0 0
        %587 = vmatpush1.bf16.msra.mxu0 0
        %588 = vmatprep.subr.bf16.mxu0 0
        %589 = vmatpush1.bf16.msra.mxu0 0
        %590 = vmatprep.subr.bf16.mxu0 0
        %591 = vmatpush1.bf16.msra.mxu0 0
        %592 = vmatprep.subr.bf16.mxu0 0
        %593 = vmatpush1.bf16.msra.mxu0 %v576
        %594 = vmatprep.subr.bf16.mxu0 0
        %595 = vmatpush2.bf16.msra.mxu0 0
        %596 = vmatprep.subr.bf16.mxu0 0
        %597 = vmatpush2.bf16.msra.mxu0 0
        %598 = vmatprep.subr.bf16.mxu0 0
        %599 = vmatpush2.bf16.msra.mxu0 0
        %600 = vmatprep.subr.bf16.mxu0 0
        %601 = vmatpush2.bf16.msra.mxu0 0
        %602 = vmatprep.subr.bf16.mxu0 0
        %603 = vmatpush2.bf16.msra.mxu0 0
        %604 = vmatprep.subr.bf16.mxu0 0
        %605 = vmatpush2.bf16.msra.mxu0 0
        %606 = vmatprep.subr.bf16.mxu0 0
        %607 = vmatpush2.bf16.msra.mxu0 0
        %608 = vmatprep.subr.bf16.mxu0 0
        %609 = vmatpush2.bf16.msra.mxu0 0
        %610 = vmatprep.mubr.bf16.mxu0 0
        %611 = vmatmul.mubr.bf16.gmra.mxu0 %v573
        %v612 = vpop.f32.mrf.mxu0
        %v613 = vadd.f32 %v567, %v612
        %v614 = vpop.f32.mrf.mxu0
        %v615 = vpop.f32.mrf.mxu0
        %v616 = vpop.f32.mrf.mxu0
        %617 = vdwg.mxu0
        %vm618 = vcmp.ge.s32.totalorder %v395, 16
        %vm619 = vcmp.lt.s32.totalorder %v395, 24
        %vm620 = vmand %vm618, %vm619
        %vm621 = vmpackc.low %vm620, %vm620
        %v622 = vsel %vm621, %v335, 0
        %v623 = vsel %vm621, %v393, 0
        %s624 = scalar_lea.vmem [#allocation7], 16
        %v625 = vld [vmem:[%s624] sm:$0xff]
        %v627 = vsel %vm233, %v622, 0
        %629 = vmatprep.subr.bf16.mxu0 0
        %630 = vmatpush1.bf16.xpose.msra.mxu0 0
        %631 = vmatprep.subr.bf16.mxu0 0
        %632 = vmatpush1.bf16.xpose.msra.mxu0 0
        %633 = vmatprep.subr.bf16.mxu0 0
        %634 = vmatpush1.bf16.xpose.msra.mxu0 0
        %635 = vmatprep.subr.bf16.mxu0 0
        %636 = vmatpush1.bf16.xpose.msra.mxu0 0
        %637 = vmatprep.subr.bf16.mxu0 0
        %638 = vmatpush1.bf16.xpose.msra.mxu0 0
        %639 = vmatprep.subr.bf16.mxu0 0
        %640 = vmatpush1.bf16.xpose.msra.mxu0 0
        %641 = vmatprep.subr.bf16.mxu0 0
        %642 = vmatpush1.bf16.xpose.msra.mxu0 0
        %643 = vmatprep.subr.bf16.mxu0 0
        %644 = vmatpush1.bf16.xpose.msra.mxu0 %v407
        %645 = vmatprep.subr.bf16.mxu0 0
        %646 = vmatpush2.bf16.xpose.msra.mxu0 0
        %647 = vmatprep.subr.bf16.mxu0 0
        %648 = vmatpush2.bf16.xpose.msra.mxu0 0
        %649 = vmatprep.subr.bf16.mxu0 0
        %650 = vmatpush2.bf16.xpose.msra.mxu0 0
        %651 = vmatprep.subr.bf16.mxu0 0
        %652 = vmatpush2.bf16.xpose.msra.mxu0 0
        %653 = vmatprep.subr.bf16.mxu0 0
        %654 = vmatpush2.bf16.xpose.msra.mxu0 0
        %655 = vmatprep.subr.bf16.mxu0 0
        %656 = vmatpush2.bf16.xpose.msra.mxu0 0
        %657 = vmatprep.subr.bf16.mxu0 0
        %658 = vmatpush2.bf16.xpose.msra.mxu0 0
        %659 = vmatprep.subr.bf16.mxu0 0
        %660 = vmatpush2.bf16.xpose.msra.mxu0 0
        %661 = vmatprep.mubr.bf16.mxu0 0
        %662 = vmatmul.mubr.bf16.gmra.mxu0 %v627
        %v663 = vpop.f32.mrf.mxu0
        %v664 = vadd.f32 %v625, %v663
        %v665 = vpop.f32.mrf.mxu0
        %v666 = vpop.f32.mrf.mxu0
        %v667 = vpop.f32.mrf.mxu0
        %668 = vdwg.mxu0
        %v669 = vsel %vm449, %v664, -inf
        %670 = vmax.xlane.f32.xlu0 %v669
        %v671 = vpop.xlane.xlu0 %670
        %v672 = vsub.f32 %v664, %v671
        %v673 = vmul.f32 %v672, 1.442695
        %v674 = vpow.pop %v673
        %v675 = vsel %vm449, %v674, 0.0
        %676 = vadd.xlane.f32.xlu0 %v675
        %v677 = vpop.xlane.xlu0 %676
        %v678 = vrcp.pop %v677
        %v679 = vmul.f32 %v674, %v678
        %v680 = vpack.c.bf16 %v679, %v679
        %v682 = vsel %vm449, %v680, 0
        %v685 = vsel %vm528, %v623, 0
        %687 = vmatprep.subr.bf16.mxu0 0
        %688 = vmatpush1.bf16.msra.mxu0 0
        %689 = vmatprep.subr.bf16.mxu0 0
        %690 = vmatpush1.bf16.msra.mxu0 0
        %691 = vmatprep.subr.bf16.mxu0 0
        %692 = vmatpush1.bf16.msra.mxu0 0
        %693 = vmatprep.subr.bf16.mxu0 0
        %694 = vmatpush1.bf16.msra.mxu0 0
        %695 = vmatprep.subr.bf16.mxu0 0
        %696 = vmatpush1.bf16.msra.mxu0 0
        %697 = vmatprep.subr.bf16.mxu0 0
        %698 = vmatpush1.bf16.msra.mxu0 0
        %699 = vmatprep.subr.bf16.mxu0 0
        %700 = vmatpush1.bf16.msra.mxu0 0
        %701 = vmatprep.subr.bf16.mxu0 0
        %702 = vmatpush1.bf16.msra.mxu0 %v685
        %703 = vmatprep.subr.bf16.mxu0 0
        %704 = vmatpush2.bf16.msra.mxu0 0
        %705 = vmatprep.subr.bf16.mxu0 0
        %706 = vmatpush2.bf16.msra.mxu0 0
        %707 = vmatprep.subr.bf16.mxu0 0
        %708 = vmatpush2.bf16.msra.mxu0 0
        %709 = vmatprep.subr.bf16.mxu0 0
        %710 = vmatpush2.bf16.msra.mxu0 0
        %711 = vmatprep.subr.bf16.mxu0 0
        %712 = vmatpush2.bf16.msra.mxu0 0
        %713 = vmatprep.subr.bf16.mxu0 0
        %714 = vmatpush2.bf16.msra.mxu0 0
        %715 = vmatprep.subr.bf16.mxu0 0
        %716 = vmatpush2.bf16.msra.mxu0 0
        %717 = vmatprep.subr.bf16.mxu0 0
        %718 = vmatpush2.bf16.msra.mxu0 0
        %719 = vmatprep.mubr.bf16.mxu0 0
        %720 = vmatmul.mubr.bf16.gmra.mxu0 %v682
        %v721 = vpop.f32.mrf.mxu0
        %v722 = vadd.f32 0.0, %v721
        %v723 = vpop.f32.mrf.mxu0
        %v724 = vpop.f32.mrf.mxu0
        %v725 = vpop.f32.mrf.mxu0
        %726 = vdwg.mxu0
        %v727 = vadd.f32 %v613, %v722
        %vm728 = vcmp.ge.s32.totalorder %v395, 24
        %vm729 = vcmp.lt.s32.totalorder %v395, 32
        %vm730 = vmand %vm728, %vm729
        %vm731 = vmpackc.low %vm730, %vm730
        %v732 = vsel %vm731, %v335, 0
        %v733 = vsel %vm731, %v393, 0
        %s734 = scalar_lea.vmem [#allocation7], 24
        %v735 = vld [vmem:[%s734] sm:$0xff]
        %v737 = vsel %vm233, %v732, 0
        %739 = vmatprep.subr.bf16.mxu0 0
        %740 = vmatpush1.bf16.xpose.msra.mxu0 0
        %741 = vmatprep.subr.bf16.mxu0 0
        %742 = vmatpush1.bf16.xpose.msra.mxu0 0
        %743 = vmatprep.subr.bf16.mxu0 0
        %744 = vmatpush1.bf16.xpose.msra.mxu0 0
        %745 = vmatprep.subr.bf16.mxu0 0
        %746 = vmatpush1.bf16.xpose.msra.mxu0 0
        %747 = vmatprep.subr.bf16.mxu0 0
        %748 = vmatpush1.bf16.xpose.msra.mxu0 0
        %749 = vmatprep.subr.bf16.mxu0 0
        %750 = vmatpush1.bf16.xpose.msra.mxu0 0
        %751 = vmatprep.subr.bf16.mxu0 0
        %752 = vmatpush1.bf16.xpose.msra.mxu0 0
        %753 = vmatprep.subr.bf16.mxu0 0
        %754 = vmatpush1.bf16.xpose.msra.mxu0 %v407
        %755 = vmatprep.subr.bf16.mxu0 0
        %756 = vmatpush2.bf16.xpose.msra.mxu0 0
        %757 = vmatprep.subr.bf16.mxu0 0
        %758 = vmatpush2.bf16.xpose.msra.mxu0 0
        %759 = vmatprep.subr.bf16.mxu0 0
        %760 = vmatpush2.bf16.xpose.msra.mxu0 0
        %761 = vmatprep.subr.bf16.mxu0 0
        %762 = vmatpush2.bf16.xpose.msra.mxu0 0
        %763 = vmatprep.subr.bf16.mxu0 0
        %764 = vmatpush2.bf16.xpose.msra.mxu0 0
        %765 = vmatprep.subr.bf16.mxu0 0
        %766 = vmatpush2.bf16.xpose.msra.mxu0 0
        %767 = vmatprep.subr.bf16.mxu0 0
        %768 = vmatpush2.bf16.xpose.msra.mxu0 0
        %769 = vmatprep.subr.bf16.mxu0 0
        %770 = vmatpush2.bf16.xpose.msra.mxu0 0
        %771 = vmatprep.mubr.bf16.mxu0 0
        %772 = vmatmul.mubr.bf16.gmra.mxu0 %v737
        %v773 = vpop.f32.mrf.mxu0
        %v774 = vadd.f32 %v735, %v773
        %v775 = vpop.f32.mrf.mxu0
        %v776 = vpop.f32.mrf.mxu0
        %v777 = vpop.f32.mrf.mxu0
        %778 = vdwg.mxu0
        %v779 = vsel %vm449, %v774, -inf
        %780 = vmax.xlane.f32.xlu0 %v779
        %v781 = vpop.xlane.xlu0 %780
        %v782 = vsub.f32 %v774, %v781
        %v783 = vmul.f32 %v782, 1.442695
        %v784 = vpow.pop %v783
        %v785 = vsel %vm449, %v784, 0.0
        %786 = vadd.xlane.f32.xlu0 %v785
        %v787 = vpop.xlane.xlu0 %786
        %v788 = vrcp.pop %v787
        %v789 = vmul.f32 %v784, %v788
        %v790 = vpack.c.bf16 %v789, %v789
        %v792 = vsel %vm449, %v790, 0
        %v795 = vsel %vm528, %v733, 0
        %797 = vmatprep.subr.bf16.mxu0 0
        %798 = vmatpush1.bf16.msra.mxu0 0
        %799 = vmatprep.subr.bf16.mxu0 0
        %800 = vmatpush1.bf16.msra.mxu0 0
        %801 = vmatprep.subr.bf16.mxu0 0
        %802 = vmatpush1.bf16.msra.mxu0 0
        %803 = vmatprep.subr.bf16.mxu0 0
        %804 = vmatpush1.bf16.msra.mxu0 0
        %805 = vmatprep.subr.bf16.mxu0 0
        %806 = vmatpush1.bf16.msra.mxu0 0
        %807 = vmatprep.subr.bf16.mxu0 0
        %808 = vmatpush1.bf16.msra.mxu0 0
        %809 = vmatprep.subr.bf16.mxu0 0
        %810 = vmatpush1.bf16.msra.mxu0 0
        %811 = vmatprep.subr.bf16.mxu0 0
        %812 = vmatpush1.bf16.msra.mxu0 %v795
        %813 = vmatprep.subr.bf16.mxu0 0
        %814 = vmatpush2.bf16.msra.mxu0 0
        %815 = vmatprep.subr.bf16.mxu0 0
        %816 = vmatpush2.bf16.msra.mxu0 0
        %817 = vmatprep.subr.bf16.mxu0 0
        %818 = vmatpush2.bf16.msra.mxu0 0
        %819 = vmatprep.subr.bf16.mxu0 0
        %820 = vmatpush2.bf16.msra.mxu0 0
        %821 = vmatprep.subr.bf16.mxu0 0
        %822 = vmatpush2.bf16.msra.mxu0 0
        %823 = vmatprep.subr.bf16.mxu0 0
        %824 = vmatpush2.bf16.msra.mxu0 0
        %825 = vmatprep.subr.bf16.mxu0 0
        %826 = vmatpush2.bf16.msra.mxu0 0
        %827 = vmatprep.subr.bf16.mxu0 0
        %828 = vmatpush2.bf16.msra.mxu0 0
        %829 = vmatprep.mubr.bf16.mxu0 0
        %830 = vmatmul.mubr.bf16.gmra.mxu0 %v792
        %v831 = vpop.f32.mrf.mxu0
        %v832 = vadd.f32 0.0, %v831
        %v833 = vpop.f32.mrf.mxu0
        %v834 = vpop.f32.mrf.mxu0
        %v835 = vpop.f32.mrf.mxu0
        %836 = vdwg.mxu0
        %v837 = vadd.f32 %v727, %v832
        %838 = vst.msk [vmem:[%s214] sm:$0xff] %vm233, %v837
        %s839 = sand.u32 %s97, 1
        %s840 = scalar_lea.sflag [#allocation4], %s839
        %s841 = sand.u32 %s97, 1
        %s842 = smul.addr %s841, 8
        %s843 = scalar_lea.vmem [#allocation8], %s842
        // Predicated region
        $region45: #{tpu_custom_call.1} parent=31 // pred_check
          %p844 = pneg %p107
        $region46: #{tpu_custom_call.1} parent=31 // pred_check_branch
          %846 = sbr.rel (%p844) target = $region48
        $region47: #{tpu_custom_call.1} parent=31 // pred_region
          %s848 = ssub.s32 128, 128
          %849 = vsyncadd %s840, %s848
          %s850 = smul.addr %s21, 128
          %s851 = scalar_lea.hbm %s3, %s850
          %s853 = sshll.u32 %s843, 4
          %s854 = int_to_ptr.vmem [resolvable:$true] %s853
          %856 = dma.vmem_to_hbm [thread:$0]  %s854, 128, %s851, %s840
        $region48: #{tpu_custom_call.1} parent=31 // pred_fallthru
          _
      $region32: #{tpu_custom_call.1} parent=5 // pred_fallthru
        _
      %p857 = scmp.le.s32.totalorder 2, %s16
      // Predicated region
      $region49: #{tpu_custom_call.1} parent=5 // pred_check
        %p858 = pneg %p857
      $region50: #{tpu_custom_call.1} parent=5 // pred_check_branch
        %860 = sbr.rel (%p858) target = $region52
      $region51: #{tpu_custom_call.1} parent=5 // pred_region
        %s861 = ssub.s32 %s16, 2
        // Predicated region
        $region53: #{tpu_custom_call.1} parent=51 // pred_check
          %p862 = pneg %p113
        $region54: #{tpu_custom_call.1} parent=51 // pred_check_branch
          %864 = sbr.rel (%p862) target = $region56
        $region55: #{tpu_custom_call.1} parent=51 // pred_region
          %s865 = sand.u32 %s98, 1
          %s866 = scalar_lea.sflag [#allocation4], %s865
          %s867 = sand.u32 %s98, 1
          %s868 = smul.addr %s867, 8
          %s869 = scalar_lea.vmem [#allocation8], %s868
          %870 = dma.done %s866, 128
        $region56: #{tpu_custom_call.1} parent=51 // pred_fallthru
          _
      $region52: #{tpu_custom_call.1} parent=5 // pred_fallthru
        _
    $region6: #{tpu_custom_call.1} parent=1 // loop_footer
      %s20 = sadd.s32 1, %s16
    $region7: #{tpu_custom_call.1} parent=1 // loop_footer_branch
      %15 = sbr.rel target = $region3
    $region8: #{tpu_custom_call.1} parent=1 // loop_exit
      _
    %871 = vsyncpa [#allocation3], 1
    %s872 = scalar_lea.sflag [#allocation3], 1
    %873 = vsyncpa %s872, 1
    %874 = vsyncpa [#allocation6], 1
    %875 = vsyncpa [#allocation4], 1
    %s876 = scalar_lea.sflag [#allocation4], 1
    %877 = vsyncpa %s876, 1

</llo_original>
